<compile_context>
chip_gen: v7x
topology: tpu7x:2x2x1
jax: 0.10.0
libtpu: 0.0.40
codegen_flags: <defaults>
</compile_context>

<pallas_src>
import functools

import jax
import jax.numpy as jnp
from jax.experimental import pallas as pl
from jax.experimental.pallas import tpu as pltpu


def _round_up(v, m):
    return (v + m - 1) // m * m


def _mlp_kernel(x_ref, w1_ref, b1_ref, w2_ref, b2_ref, o_ref, acc_ref):
    # Grid: (batch tiles, hidden-dim tiles).  The hidden dim is a reduction
    # axis for fc2, handled with a resident f32 accumulator (P3 pattern).
    k = pl.program_id(1)

    @pl.when(k == 0)
    def _():
        acc_ref[...] = jnp.zeros_like(acc_ref)

    # fc1 slice + bias + ReLU (MXU matmul, f32 accumulation).
    h = jnp.dot(x_ref[...], w1_ref[...], preferred_element_type=jnp.float32)
    h = jnp.maximum(h + b1_ref[...], 0.0)          # b1_ref is (1, block_h)

    # Partial fc2 contribution from this hidden-dim slice.
    acc_ref[...] += jnp.dot(h.astype(w2_ref.dtype), w2_ref[...],
                            preferred_element_type=jnp.float32)

    @pl.when(k == pl.num_programs(1) - 1)
    def _():
        o_ref[...] = (acc_ref[...] + b2_ref[...]).astype(o_ref.dtype)


@functools.partial(jax.jit, static_argnames=("block_b", "block_h"))
def mlp_forward(x, w1, b1, w2, b2, *, block_b=None, block_h=None):
    """x: [B, D_in]; w1: [D_in, H]; b1: [H]; w2: [H, D_out]; b2: [D_out]."""
    B, D_in = x.shape
    H = w1.shape[1]
    D_out = w2.shape[1]
    dtype = x.dtype
    itemsize = jnp.dtype(dtype).itemsize

    # ---- lane-dense padding: feature dims -> multiples of 128 --------------
    D_in_p = _round_up(D_in, 128)
    H_p = _round_up(H, 128)
    D_out_p = _round_up(D_out, 128)

    # ---- batch tile (M): up to 256 rows, multiple of 8 sublanes ------------
    if block_b is None:
        block_b = min(256, _round_up(B, 8))
    block_b = max(8, _round_up(block_b, 8))
    B_p = _round_up(B, block_b)

    # ---- hidden-dim tile (K): tile only if whole weights would stress VMEM
    #      (v7x has 64 MiB physical; keep weight-resident bytes bounded) -----
    if block_h is None:
        block_h = H_p
        weight_bytes = (D_in_p * H_p + H_p * D_out_p) * itemsize
        if weight_bytes > (24 << 20):
            cand = 512
            while H_p % cand != 0:
                cand += 128
            block_h = cand
    block_h = min(_round_up(block_h, 128), H_p)
    assert H_p % block_h == 0, "block_h must divide the padded hidden dim"

    # ---- zero-pad operands (padding is a mathematical no-op here) ----------
    x_p = jnp.zeros((B_p, D_in_p), dtype).at[:B, :D_in].set(x)
    w1_p = jnp.zeros((D_in_p, H_p), w1.dtype).at[:D_in, :H].set(w1)
    b1_p = jnp.zeros((1, H_p), b1.dtype).at[0, :H].set(b1)
    w2_p = jnp.zeros((H_p, D_out_p), w2.dtype).at[:H, :D_out].set(w2)
    b2_p = jnp.zeros((1, D_out_p), b2.dtype).at[0, :D_out].set(b2)

    grid = (B_p // block_b, H_p // block_h)

    # ---- VMEM budget: double-buffered tiles + scratch, with headroom -------
    tile_bytes = (
        2 * block_b * D_in_p * itemsize                    # x tile
        + 2 * (D_in_p * block_h + block_h) * itemsize      # w1 + b1 tiles
        + 2 * (block_h * D_out_p + D_out_p) * itemsize     # w2 + b2 tiles
        + 2 * block_b * D_out_p * itemsize                 # out tile
        + block_b * D_out_p * 4                            # f32 accumulator
        + block_b * block_h * 4                            # fc1 intermediate
    )
    vmem_limit = int(min(max(2 * tile_bytes, 32 << 20), 64 << 20))

    flops = 2 * B_p * H_p * (D_in_p + D_out_p)
    bytes_accessed = int(
        (B_p * D_in_p + D_in_p * H_p + H_p + H_p * D_out_p + D_out_p
         + B_p * D_out_p) * itemsize)

    out_p = pl.pallas_call(
        _mlp_kernel,
        out_shape=jax.ShapeDtypeStruct((B_p, D_out_p), dtype),
        grid_spec=pltpu.PrefetchScalarGridSpec(
            num_scalar_prefetch=0,
            grid=grid,
            in_specs=[
                pl.BlockSpec((block_b, D_in_p), lambda i, k: (i, 0)),   # x
                pl.BlockSpec((D_in_p, block_h), lambda i, k: (0, k)),   # w1
                pl.BlockSpec((1, block_h), lambda i, k: (0, k)),        # b1
                pl.BlockSpec((block_h, D_out_p), lambda i, k: (k, 0)),  # w2
                pl.BlockSpec((1, D_out_p), lambda i, k: (0, 0)),        # b2
            ],
            out_specs=pl.BlockSpec((block_b, D_out_p), lambda i, k: (i, 0)),
            scratch_shapes=[pltpu.VMEM((block_b, D_out_p), jnp.float32)],
        ),
        compiler_params=pltpu.CompilerParams(
            dimension_semantics=("parallel", "arbitrary"),
            vmem_limit_bytes=vmem_limit,
        ),
        cost_estimate=pl.CostEstimate(
            flops=flops, transcendentals=0, bytes_accessed=bytes_accessed),
    )(x_p, w1_p, b1_p, w2_p, b2_p)

    # Slice off the padded rows / columns.
    return out_p[:B, :D_out]


def init_mlp_params(key, input_dim, hidden_dim, output_dim, dtype=jnp.float32):
    """Deterministic init matching nn.Linear's U(-1/sqrt(fan_in), 1/sqrt(fan_in))."""
    k1, k2, k3, k4 = jax.random.split(key, 4)
    bound1 = 1.0 / jnp.sqrt(input_dim)
    bound2 = 1.0 / jnp.sqrt(hidden_dim)
    # stored as [in, out] (transposed vs. PyTorch's [out, in])
    w1 = jax.random.uniform(k1, (input_dim, hidden_dim), dtype, -bound1, bound1)
    b1 = jax.random.uniform(k2, (hidden_dim,), dtype, -bound1, bound1)
    w2 = jax.random.uniform(k3, (hidden_dim, output_dim), dtype, -bound2, bound2)
    b2 = jax.random.uniform(k4, (output_dim,), dtype, -bound2, bound2)
    return w1, b1, w2, b2


if __name__ == "__main__":
    # small shapes consistent with the module: x is [batch, input_dim]
    batch, input_dim, hidden_dim, output_dim = 8, 32, 64, 16

    key = jax.random.PRNGKey(0)
    kx, kp = jax.random.split(key)
    x = jax.random.normal(kx, (batch, input_dim), dtype=jnp.float32)
    w1, b1, w2, b2 = init_mlp_params(kp, input_dim, hidden_dim, output_dim)

    out = mlp_forward(x, w1, b1, w2, b2)
    out = jax.block_until_ready(out)

    # pure-JAX reference check
    ref = jnp.maximum(x @ w1 + b1, 0.0) @ w2 + b2
    assert out.shape == (batch, output_dim)
    assert jnp.allclose(out, ref, atol=1e-5, rtol=1e-5), "mismatch vs reference"

    print("KERNEL_OK")
</pallas_src>

<mosaic_0001>
module attributes {stable_mosaic.version = 11 : i64} {
  func.func @_mlp_kernel(%arg0: i32, %arg1: i32, %arg2: memref<8x128xf32, #tpu.memory_space<vmem>>, %arg3: memref<128x128xf32, #tpu.memory_space<vmem>>, %arg4: memref<1x128xf32, #tpu.memory_space<vmem>>, %arg5: memref<128x128xf32, #tpu.memory_space<vmem>>, %arg6: memref<1x128xf32, #tpu.memory_space<vmem>>, %arg7: memref<8x128xf32, #tpu.memory_space<vmem>>, %arg8: memref<8x128xf32, #tpu.memory_space<vmem>>) attributes {dimension_semantics = [#tpu.dimension_semantics<parallel>, #tpu.dimension_semantics<arbitrary>], iteration_bounds = array<i64: 1, 1>, scalar_prefetch = 0 : i64, scratch_operands = 1 : i64, tpu.core_type = #tpu.core_type<tc>, window_params = [{transform_indices = @transform_0, window_bounds = array<i64: 8, 128>}, {transform_indices = @transform_1, window_bounds = array<i64: 128, 128>}, {transform_indices = @transform_2, window_bounds = array<i64: 1, 128>}, {transform_indices = @transform_3, window_bounds = array<i64: 128, 128>}, {pipeline_mode = #tpu.pipeline_mode<synchronous>, transform_indices = @transform_4, window_bounds = array<i64: 1, 128>}, {transform_indices = @transform_5, window_bounds = array<i64: 8, 128>}]} {
    %c0_i32 = arith.constant 0 : i32
    %0 = arith.cmpi eq, %arg1, %c0_i32 : i32
    %1 = arith.extui %0 : i1 to i32
    %c0_i32_0 = arith.constant 0 : i32
    %2 = arith.cmpi ne, %1, %c0_i32_0 : i32
    scf.if %2 {
      %cst_16 = arith.constant 0.000000e+00 : f32
      %19 = vector.broadcast %cst_16 : f32 to vector<8x128xf32>
      %c0_17 = arith.constant 0 : index
      %c0_18 = arith.constant 0 : index
      %20 = vector.load %arg8[%c0_17, %c0_18] : memref<8x128xf32, #tpu.memory_space<vmem>>, vector<8x128xf32>
      tpu.vector_store %arg8[%c0_17, %c0_18], %19 {strides = array<i32>} : memref<8x128xf32, #tpu.memory_space<vmem>>, vector<8x128xf32>,
    } else {
    }
    %c0 = arith.constant 0 : index
    %c0_1 = arith.constant 0 : index
    %3 = vector.load %arg2[%c0, %c0_1] : memref<8x128xf32, #tpu.memory_space<vmem>>, vector<8x128xf32>
    %c0_2 = arith.constant 0 : index
    %c0_3 = arith.constant 0 : index
    %4 = vector.load %arg3[%c0_2, %c0_3] : memref<128x128xf32, #tpu.memory_space<vmem>>, vector<128x128xf32>
    %cst = arith.constant dense<0.000000e+00> : vector<8x128xf32>
    %5 = tpu.matmul %3, %4, %cst {dimension_numbers = #tpu.dot_dimension_numbers<[1], [0], [0], [1], [0, 0, 1, 1], [], []>} : vector<8x128xf32>, vector<128x128xf32>, vector<8x128xf32> -> vector<8x128xf32>
    %c0_4 = arith.constant 0 : index
    %c0_5 = arith.constant 0 : index
    %6 = vector.load %arg4[%c0_4, %c0_5] : memref<1x128xf32, #tpu.memory_space<vmem>>, vector<1x128xf32>
    %7 = vector.broadcast %6 : vector<1x128xf32> to vector<8x128xf32>
    %8 = arith.addf %5, %7 : vector<8x128xf32>
    %cst_6 = arith.constant 0.000000e+00 : f32
    %9 = vector.broadcast %cst_6 : f32 to vector<8x128xf32>
    %10 = arith.maximumf %8, %9 : vector<8x128xf32>
    %c0_7 = arith.constant 0 : index
    %c0_8 = arith.constant 0 : index
    %11 = vector.load %arg8[%c0_7, %c0_8] : memref<8x128xf32, #tpu.memory_space<vmem>>, vector<8x128xf32>
    %c0_9 = arith.constant 0 : index
    %c0_10 = arith.constant 0 : index
    %12 = vector.load %arg5[%c0_9, %c0_10] : memref<128x128xf32, #tpu.memory_space<vmem>>, vector<128x128xf32>
    %cst_11 = arith.constant dense<0.000000e+00> : vector<8x128xf32>
    %13 = tpu.matmul %10, %12, %cst_11 {dimension_numbers = #tpu.dot_dimension_numbers<[1], [0], [0], [1], [0, 0, 1, 1], [], []>} : vector<8x128xf32>, vector<128x128xf32>, vector<8x128xf32> -> vector<8x128xf32>
    %14 = arith.addf %11, %13 : vector<8x128xf32>
    %c0_12 = arith.constant 0 : index
    %c0_13 = arith.constant 0 : index
    %15 = vector.load %arg8[%c0_12, %c0_13] : memref<8x128xf32, #tpu.memory_space<vmem>>, vector<8x128xf32>
    tpu.vector_store %arg8[%c0_12, %c0_13], %14 {strides = array<i32>} : memref<8x128xf32, #tpu.memory_space<vmem>>, vector<8x128xf32>,
    %c0_i32_14 = arith.constant 0 : i32
    %16 = arith.cmpi eq, %arg1, %c0_i32_14 : i32
    %17 = arith.extui %16 : i1 to i32
    %c0_i32_15 = arith.constant 0 : i32
    %18 = arith.cmpi ne, %17, %c0_i32_15 : i32
    scf.if %18 {
      %c0_16 = arith.constant 0 : index
      %c0_17 = arith.constant 0 : index
      %19 = vector.load %arg8[%c0_16, %c0_17] : memref<8x128xf32, #tpu.memory_space<vmem>>, vector<8x128xf32>
      %c0_18 = arith.constant 0 : index
      %c0_19 = arith.constant 0 : index
      %20 = vector.load %arg6[%c0_18, %c0_19] : memref<1x128xf32, #tpu.memory_space<vmem>>, vector<1x128xf32>
      %21 = vector.broadcast %20 : vector<1x128xf32> to vector<8x128xf32>
      %22 = arith.addf %19, %21 : vector<8x128xf32>
      %c0_20 = arith.constant 0 : index
      %c0_21 = arith.constant 0 : index
      %23 = vector.load %arg7[%c0_20, %c0_21] : memref<8x128xf32, #tpu.memory_space<vmem>>, vector<8x128xf32>
      tpu.vector_store %arg7[%c0_20, %c0_21], %22 {strides = array<i32>} : memref<8x128xf32, #tpu.memory_space<vmem>>, vector<8x128xf32>,
    } else {
    }
    return
  }
  func.func @transform_0(%arg0: i32, %arg1: i32) -> (i32, i32) {
    %c0_i32 = arith.constant 0 : i32
    %c0_i32_0 = arith.constant 0 : i32
    return %arg0, %c0_i32 : i32, i32
  }
  func.func @transform_1(%arg0: i32, %arg1: i32) -> (i32, i32) {
    %c0_i32 = arith.constant 0 : i32
    %c0_i32_0 = arith.constant 0 : i32
    return %c0_i32, %arg1 : i32, i32
  }
  func.func @transform_2(%arg0: i32, %arg1: i32) -> (i32, i32) {
    %c0_i32 = arith.constant 0 : i32
    %c0_i32_0 = arith.constant 0 : i32
    return %c0_i32, %arg1 : i32, i32
  }
  func.func @transform_3(%arg0: i32, %arg1: i32) -> (i32, i32) {
    %c0_i32 = arith.constant 0 : i32
    %c0_i32_0 = arith.constant 0 : i32
    return %arg1, %c0_i32 : i32, i32
  }
  func.func @transform_4(%arg0: i32, %arg1: i32) -> (i32, i32) {
    %c0_i32 = arith.constant 0 : i32
    %c0_i32_0 = arith.constant 0 : i32
    %c0_i32_1 = arith.constant 0 : i32
    return %c0_i32, %c0_i32_0 : i32, i32
  }
  func.func @transform_5(%arg0: i32, %arg1: i32) -> (i32, i32) {
    %c0_i32 = arith.constant 0 : i32
    %c0_i32_0 = arith.constant 0 : i32
    return %arg0, %c0_i32 : i32, i32
  }
}

</mosaic_0001>

<llo_original>
// kernel: mlp_forward.1
$region0: #{mlp_forward.1}
  #allocation0 [shape = 'u32[]', space=smem, size = 0x4, offset = 0x4, fixed_abs, tag = 'smem constant byte address 0x4 - core index']
  #allocation1 [shape = 'u32[144,128]{1,0:T(1,128)}', space=vmem, size = 0x12000, scoped, tag = 'internal scratch']
  #allocation2 [shape = 'f32[8,128]{1,0:T(8,128)}', space=vmem, size = 0x1000, scoped, tag = 'scratch operand']
  %s0 = inlined_call_operand.vmem [shape: f32[8,128], index: 0, kind: input, shape index: {}]
  %s1 = inlined_call_operand.vmem [shape: f32[128,128], index: 1, kind: input, shape index: {}]
  %s2 = inlined_call_operand.vmem [shape: f32[1,128], index: 2, kind: input, shape index: {}]
  %s3 = inlined_call_operand.vmem [shape: f32[128,128], index: 3, kind: input, shape index: {}]
  %s4 = inlined_call_operand.vmem [shape: f32[1,128], index: 4, kind: input, shape index: {}]
  %s5 = inlined_call_operand.hbm [shape: f32[8,128], index: 5, kind: output, shape index: {}]
  %s6 = sld [smem:[#allocation0]]
  $region38: #{mlp_forward.1} parent=0
    _
  %s8 = ssub.s32 1, %s6
  %s9 = scalar_select 0, %s8, %s6
  $region1: #{mlp_forward.1} parent=0
    #allocation3 [shape = 'u8[4096]{0}', space=vmem, size = 0x1000, scoped, tag = 'output window, operand 0, single buffered']
    #allocation4 [shape = 's32[1]{0}', space=sflag, size = 0x4, scoped, tag = 'scoped memory for mlp_forward.1']
    %10 = vsyncpa [#allocation4], 0
    // Predicated region
    $region2: #{mlp_forward.1} parent=1 // pred_check
      _
    $region3: #{mlp_forward.1} parent=1 // pred_check_branch
      %12 = sbr.rel (0) target = $region5
    $region4: #{mlp_forward.1} parent=1 // pred_region
      _
    $region5: #{mlp_forward.1} parent=1 // pred_fallthru
      _
    // Predicated region
    $region6: #{mlp_forward.1} parent=1 // pred_check
      _
    $region7: #{mlp_forward.1} parent=1 // pred_check_branch
      %14 = sbr.rel (0) target = $region9
    $region8: #{mlp_forward.1} parent=1 // pred_region
      _
    $region9: #{mlp_forward.1} parent=1 // pred_fallthru
      _
    // Predicated region
    $region10: #{mlp_forward.1} parent=1 // pred_check
      _
    $region11: #{mlp_forward.1} parent=1 // pred_check_branch
      %16 = sbr.rel (0) target = $region13
    $region12: #{mlp_forward.1} parent=1 // pred_region
      _
    $region13: #{mlp_forward.1} parent=1 // pred_fallthru
      _
    // Predicated region
    $region14: #{mlp_forward.1} parent=1 // pred_check
      _
    $region15: #{mlp_forward.1} parent=1 // pred_check_branch
      %18 = sbr.rel (0) target = $region17
    $region16: #{mlp_forward.1} parent=1 // pred_region
      _
    $region17: #{mlp_forward.1} parent=1 // pred_fallthru
      _
    // Predicated region
    $region18: #{mlp_forward.1} parent=1 // pred_check
      _
    $region19: #{mlp_forward.1} parent=1 // pred_check_branch
      %20 = sbr.rel (0) target = $region21
    $region20: #{mlp_forward.1} parent=1 // pred_region
      _
    $region21: #{mlp_forward.1} parent=1 // pred_fallthru
      _
    %p21 = scmp.eq.s32.totalorder 0, 0
    // Predicated region
    $region22: #{mlp_forward.1} parent=1 // pred_check
      %p22 = pneg %p21
    $region23: #{mlp_forward.1} parent=1 // pred_check_branch
      %24 = sbr.rel (%p22) target = $region25
    $region24: #{mlp_forward.1} parent=1 // pred_region
      %25 = vst [vmem:[#allocation2] sm:$0xff] 0.0
    $region25: #{mlp_forward.1} parent=1 // pred_fallthru
      _
    %v26 = vld [vmem:[%s0] sm:$0xff]
    %v27 = vld [vmem:[%s1] sm:$0xff]
    %v28 = vld [vmem:[%s1 + $0x8] sm:$0xff]
    %v29 = vld [vmem:[%s1 + $0x10] sm:$0xff]
    %v30 = vld [vmem:[%s1 + $0x18] sm:$0xff]
    %v31 = vld [vmem:[%s1 + $0x20] sm:$0xff]
    %v32 = vld [vmem:[%s1 + $0x28] sm:$0xff]
    %v33 = vld [vmem:[%s1 + $0x30] sm:$0xff]
    %v34 = vld [vmem:[%s1 + $0x38] sm:$0xff]
    %v35 = vld [vmem:[%s1 + $0x40] sm:$0xff]
    %v36 = vld [vmem:[%s1 + $0x48] sm:$0xff]
    %v37 = vld [vmem:[%s1 + $0x50] sm:$0xff]
    %v38 = vld [vmem:[%s1 + $0x58] sm:$0xff]
    %v39 = vld [vmem:[%s1 + $0x60] sm:$0xff]
    %v40 = vld [vmem:[%s1 + $0x68] sm:$0xff]
    %v41 = vld [vmem:[%s1 + $0x70] sm:$0xff]
    %v42 = vld [vmem:[%s1 + $0x78] sm:$0xff]
    %v43 = vld [vmem:[%s2] sm:$0x1]
    %v45 = vlaneseq
    %v46 = vshrl.u32 %v45, 7
    %v47 = vsub.s32 0, %v46
    %v48 = vrot.slane %v43, %v47
    %50 = vmatprep.subr.mxu0 0.0
    %51 = vmatpush1.msra.mxu0 %v27
    %52 = vmatprep.subr.mxu0 0.0
    %53 = vmatpush1.msra.mxu0 %v28
    %54 = vmatprep.subr.mxu0 0.0
    %55 = vmatpush1.msra.mxu0 %v29
    %56 = vmatprep.subr.mxu0 0.0
    %57 = vmatpush1.msra.mxu0 %v30
    %58 = vmatprep.subr.mxu0 0.0
    %59 = vmatpush1.msra.mxu0 %v31
    %60 = vmatprep.subr.mxu0 0.0
    %61 = vmatpush1.msra.mxu0 %v32
    %62 = vmatprep.subr.mxu0 0.0
    %63 = vmatpush1.msra.mxu0 %v33
    %64 = vmatprep.subr.mxu0 0.0
    %65 = vmatpush1.msra.mxu0 %v34
    %66 = vmatprep.subr.mxu0 0.0
    %67 = vmatpush1.msra.mxu0 %v35
    %68 = vmatprep.subr.mxu0 0.0
    %69 = vmatpush1.msra.mxu0 %v36
    %70 = vmatprep.subr.mxu0 0.0
    %71 = vmatpush1.msra.mxu0 %v37
    %72 = vmatprep.subr.mxu0 0.0
    %73 = vmatpush1.msra.mxu0 %v38
    %74 = vmatprep.subr.mxu0 0.0
    %75 = vmatpush1.msra.mxu0 %v39
    %76 = vmatprep.subr.mxu0 0.0
    %77 = vmatpush1.msra.mxu0 %v40
    %78 = vmatprep.subr.mxu0 0.0
    %79 = vmatpush1.msra.mxu0 %v41
    %80 = vmatprep.subr.mxu0 0.0
    %81 = vmatpush1.msra.mxu0 %v42
    %82 = vmatprep.subr.mxu0 0.0
    %83 = vmatpush1.msra.mxu0 0.0
    %84 = vmatprep.subr.mxu0 0.0
    %85 = vmatpush1.msra.mxu0 0.0
    %86 = vmatprep.subr.mxu0 0.0
    %87 = vmatpush1.msra.mxu0 0.0
    %88 = vmatprep.subr.mxu0 0.0
    %89 = vmatpush1.msra.mxu0 0.0
    %90 = vmatprep.subr.mxu0 0.0
    %91 = vmatpush1.msra.mxu0 0.0
    %92 = vmatprep.subr.mxu0 0.0
    %93 = vmatpush1.msra.mxu0 0.0
    %94 = vmatprep.subr.mxu0 0.0
    %95 = vmatpush1.msra.mxu0 0.0
    %96 = vmatprep.subr.mxu0 0.0
    %97 = vmatpush1.msra.mxu0 0.0
    %98 = vmatprep.subr.mxu0 0.0
    %99 = vmatpush1.msra.mxu0 0.0
    %100 = vmatprep.subr.mxu0 0.0
    %101 = vmatpush1.msra.mxu0 0.0
    %102 = vmatprep.subr.mxu0 0.0
    %103 = vmatpush1.msra.mxu0 0.0
    %104 = vmatprep.subr.mxu0 0.0
    %105 = vmatpush1.msra.mxu0 0.0
    %106 = vmatprep.subr.mxu0 0.0
    %107 = vmatpush1.msra.mxu0 0.0
    %108 = vmatprep.subr.mxu0 0.0
    %109 = vmatpush1.msra.mxu0 0.0
    %110 = vmatprep.subr.mxu0 0.0
    %111 = vmatpush1.msra.mxu0 0.0
    %112 = vmatprep.subr.mxu0 0.0
    %113 = vmatpush1.msra.mxu0 0.0
    %114 = vmatprep.mubr.f32.mxu0 0.0
    %115 = vmatmul.mubr.f32.gmra.mrb[0].mxu0 %v26
    %v116 = vpop.f32.mrb[0].mxu0
    %v117 = vadd.f32 %v48, %v116
    %v118 = vpop.f32.mrb[0].mxu0
    %119 = vdwg.mxu0
    %v120 = vmax.f32 %v117, 0.0
    %v121 = vld [vmem:[#allocation2] sm:$0xff]
    %v122 = vld [vmem:[%s3] sm:$0xff]
    %v123 = vld [vmem:[%s3 + $0x8] sm:$0xff]
    %v124 = vld [vmem:[%s3 + $0x10] sm:$0xff]
    %v125 = vld [vmem:[%s3 + $0x18] sm:$0xff]
    %v126 = vld [vmem:[%s3 + $0x20] sm:$0xff]
    %v127 = vld [vmem:[%s3 + $0x28] sm:$0xff]
    %v128 = vld [vmem:[%s3 + $0x30] sm:$0xff]
    %v129 = vld [vmem:[%s3 + $0x38] sm:$0xff]
    %v130 = vld [vmem:[%s3 + $0x40] sm:$0xff]
    %v131 = vld [vmem:[%s3 + $0x48] sm:$0xff]
    %v132 = vld [vmem:[%s3 + $0x50] sm:$0xff]
    %v133 = vld [vmem:[%s3 + $0x58] sm:$0xff]
    %v134 = vld [vmem:[%s3 + $0x60] sm:$0xff]
    %v135 = vld [vmem:[%s3 + $0x68] sm:$0xff]
    %v136 = vld [vmem:[%s3 + $0x70] sm:$0xff]
    %v137 = vld [vmem:[%s3 + $0x78] sm:$0xff]
    %138 = vmatprep.subr.mxu0 0.0
    %139 = vmatpush1.msra.mxu0 %v122
    %140 = vmatprep.subr.mxu0 0.0
    %141 = vmatpush1.msra.mxu0 %v123
    %142 = vmatprep.subr.mxu0 0.0
    %143 = vmatpush1.msra.mxu0 %v124
    %144 = vmatprep.subr.mxu0 0.0
    %145 = vmatpush1.msra.mxu0 %v125
    %146 = vmatprep.subr.mxu0 0.0
    %147 = vmatpush1.msra.mxu0 %v126
    %148 = vmatprep.subr.mxu0 0.0
    %149 = vmatpush1.msra.mxu0 %v127
    %150 = vmatprep.subr.mxu0 0.0
    %151 = vmatpush1.msra.mxu0 %v128
    %152 = vmatprep.subr.mxu0 0.0
    %153 = vmatpush1.msra.mxu0 %v129
    %154 = vmatprep.subr.mxu0 0.0
    %155 = vmatpush1.msra.mxu0 %v130
    %156 = vmatprep.subr.mxu0 0.0
    %157 = vmatpush1.msra.mxu0 %v131
    %158 = vmatprep.subr.mxu0 0.0
    %159 = vmatpush1.msra.mxu0 %v132
    %160 = vmatprep.subr.mxu0 0.0
    %161 = vmatpush1.msra.mxu0 %v133
    %162 = vmatprep.subr.mxu0 0.0
    %163 = vmatpush1.msra.mxu0 %v134
    %164 = vmatprep.subr.mxu0 0.0
    %165 = vmatpush1.msra.mxu0 %v135
    %166 = vmatprep.subr.mxu0 0.0
    %167 = vmatpush1.msra.mxu0 %v136
    %168 = vmatprep.subr.mxu0 0.0
    %169 = vmatpush1.msra.mxu0 %v137
    %170 = vmatprep.subr.mxu0 0.0
    %171 = vmatpush1.msra.mxu0 0.0
    %172 = vmatprep.subr.mxu0 0.0
    %173 = vmatpush1.msra.mxu0 0.0
    %174 = vmatprep.subr.mxu0 0.0
    %175 = vmatpush1.msra.mxu0 0.0
    %176 = vmatprep.subr.mxu0 0.0
    %177 = vmatpush1.msra.mxu0 0.0
    %178 = vmatprep.subr.mxu0 0.0
    %179 = vmatpush1.msra.mxu0 0.0
    %180 = vmatprep.subr.mxu0 0.0
    %181 = vmatpush1.msra.mxu0 0.0
    %182 = vmatprep.subr.mxu0 0.0
    %183 = vmatpush1.msra.mxu0 0.0
    %184 = vmatprep.subr.mxu0 0.0
    %185 = vmatpush1.msra.mxu0 0.0
    %186 = vmatprep.subr.mxu0 0.0
    %187 = vmatpush1.msra.mxu0 0.0
    %188 = vmatprep.subr.mxu0 0.0
    %189 = vmatpush1.msra.mxu0 0.0
    %190 = vmatprep.subr.mxu0 0.0
    %191 = vmatpush1.msra.mxu0 0.0
    %192 = vmatprep.subr.mxu0 0.0
    %193 = vmatpush1.msra.mxu0 0.0
    %194 = vmatprep.subr.mxu0 0.0
    %195 = vmatpush1.msra.mxu0 0.0
    %196 = vmatprep.subr.mxu0 0.0
    %197 = vmatpush1.msra.mxu0 0.0
    %198 = vmatprep.subr.mxu0 0.0
    %199 = vmatpush1.msra.mxu0 0.0
    %200 = vmatprep.subr.mxu0 0.0
    %201 = vmatpush1.msra.mxu0 0.0
    %202 = vmatprep.mubr.f32.mxu0 0.0
    %203 = vmatmul.mubr.f32.gmra.mrb[0].mxu0 %v120
    %v204 = vpop.f32.mrb[0].mxu0
    %v205 = vadd.f32 0.0, %v204
    %v206 = vpop.f32.mrb[0].mxu0
    %207 = vdwg.mxu0
    %v208 = vadd.f32 %v121, %v205
    %209 = vst [vmem:[#allocation2] sm:$0xff] %v208
    // Predicated region
    $region26: #{mlp_forward.1} parent=1 // pred_check
      %p210 = pneg %p21
    $region27: #{mlp_forward.1} parent=1 // pred_check_branch
      %212 = sbr.rel (%p210) target = $region29
    $region28: #{mlp_forward.1} parent=1 // pred_region
      %v213 = vld [vmem:[#allocation2] sm:$0xff]
      %v214 = vld [vmem:[%s4] sm:$0x1]
      %v216 = vlaneseq
      %v217 = vshrl.u32 %v216, 7
      %v218 = vsub.s32 0, %v217
      %v219 = vrot.slane %v214, %v218
      %v221 = vadd.f32 %v213, %v219
      %222 = vst [vmem:[#allocation3] sm:$0xff] %v221
    $region29: #{mlp_forward.1} parent=1 // pred_fallthru
      _
    // Predicated region
    $region30: #{mlp_forward.1} parent=1 // pred_check
      _
    $region31: #{mlp_forward.1} parent=1 // pred_check_branch
      %224 = sbr.rel (0) target = $region33
    $region32: #{mlp_forward.1} parent=1 // pred_region
      %s226 = ssub.s32 128, 128
      %227 = vsyncadd [#allocation4], %s226
      %s229 = sshll.u32 [#allocation3], 4
      %s230 = int_to_ptr.vmem [resolvable:$true] %s229
      %232 = dma.vmem_to_hbm [thread:$0]  %s230, 128, %s5, [#allocation4]
    $region33: #{mlp_forward.1} parent=1 // pred_fallthru
      _
    // Predicated region
    $region34: #{mlp_forward.1} parent=1 // pred_check
      _
    $region35: #{mlp_forward.1} parent=1 // pred_check_branch
      %234 = sbr.rel (0) target = $region37
    $region36: #{mlp_forward.1} parent=1 // pred_region
      %235 = dma.done [#allocation4], 128
    $region37: #{mlp_forward.1} parent=1 // pred_fallthru
      _
    %236 = vsyncpa [#allocation4], 1

</llo_original>
